<compile_context>
chip_gen: v7x
topology: tpu7x:2x2x1
jax: 0.10.0
libtpu: 0.0.40
codegen_flags: <defaults>
</compile_context>

<pallas_src>
import functools

import jax
import jax.numpy as jnp
from jax.experimental import pallas as pl
from jax.experimental.pallas import tpu as pltpu

IN_FEATURES = 750
HIDDEN = 256
OUT_FEATURES = 250
OUT_PAD = 256   # 250 -> 256 (2 x 128) for lane-dense output stores


def _round_up(x, m):
    return (x + m - 1) // m * m


def _choose_tm(batch, tm_cap):
    """Batch tile size: <= tm_cap, multiple of 8 sublanes, and >= 2 grid steps
    whenever the batch is big enough (v7x megacore sharding)."""
    if batch <= 8:
        return batch                      # single block equal to the full dim
    half = -(-batch // 2)                 # ceil(batch / 2)
    return max(8, min(tm_cap, _round_up(half, 8)))


def mlp_kernel(x_ref, w1_ref, b1_ref, w2_ref, b2_ref, o_ref):
    # x_ref:  [TM, 750] f32  (per-grid-step activation tile)
    # w1_ref: [750, 256] bf16 (grid-invariant, VMEM-resident)
    # b1_ref: [1, 256]  f32
    # w2_ref: [256, 256] bf16 (grid-invariant, cols 250..255 are zero)
    # b2_ref: [1, 256]  f32  (cols 250..255 are zero)
    # o_ref:  [TM, 256] f32
    x = x_ref[...].astype(jnp.bfloat16)            # VPU cast, overlapped w/ DMA

    # layer1: x @ W1 + b1, ReLU   (bf16 MXU, f32 accumulate)
    h = jnp.dot(x, w1_ref[...], preferred_element_type=jnp.float32)
    h = jnp.maximum(h + b1_ref[...], 0.0)

    # layer2: h @ W2 + b2          (bf16 MXU, f32 accumulate)
    out = jnp.dot(h.astype(jnp.bfloat16), w2_ref[...],
                  preferred_element_type=jnp.float32)
    o_ref[...] = (out + b2_ref[...]).astype(o_ref.dtype)


@functools.partial(jax.jit, static_argnames=("tm",))
def pytorch_mlp_forward(inp, w1, b1, w2, b2, *, tm=2048):
    """inp: any shape reshapable to [-1, 750]; weights use the PyTorch
    nn.Linear convention: w1 [256, 750], b1 [256], w2 [250, 256], b2 [250]."""
    x = inp.reshape(-1, IN_FEATURES).astype(jnp.float32)   # no padded copy
    batch = x.shape[0]

    tm_eff = _choose_tm(batch, tm)
    grid = (pl.cdiv(batch, tm_eff),)

    # One-time layout prep (tiny): transpose weights to [in, out] and cast to
    # bf16; pad W2 / b2 columns 250 -> 256 with zeros (kernel output stays
    # lane-dense and the padded columns are exactly zero).
    w1_t = w1.T.astype(jnp.bfloat16)                                  # [750, 256]
    w2_t = jnp.pad(w2.T.astype(jnp.bfloat16),
                   ((0, 0), (0, OUT_PAD - OUT_FEATURES)))             # [256, 256]
    b1_2d = b1.astype(jnp.float32).reshape(1, HIDDEN)                 # [1, 256]
    b2_2d = jnp.pad(b2.astype(jnp.float32).reshape(1, OUT_FEATURES),
                    ((0, 0), (0, OUT_PAD - OUT_FEATURES)))            # [1, 256]

    cost = pl.CostEstimate(
        flops=2 * batch * (IN_FEATURES * HIDDEN + HIDDEN * OUT_PAD),
        transcendentals=0,
        bytes_accessed=(batch * IN_FEATURES * 4            # x read (f32)
                        + batch * OUT_PAD * 4              # out write (f32)
                        + (IN_FEATURES * HIDDEN + HIDDEN * OUT_PAD) * 2
                        + (HIDDEN + OUT_PAD) * 4),
    )

    out_pad = pl.pallas_call(
        mlp_kernel,
        out_shape=jax.ShapeDtypeStruct((batch, OUT_PAD), jnp.float32),
        grid_spec=pltpu.PrefetchScalarGridSpec(
            num_scalar_prefetch=0,
            grid=grid,
            in_specs=[
                # Activation tile advances with the batch grid axis; the full
                # 750 last dim equals the array dim (no 128-multiple needed).
                pl.BlockSpec((tm_eff, IN_FEATURES), lambda i: (i, 0)),
                # Weights / biases: grid-invariant -> DMA'd once, VMEM-resident.
                pl.BlockSpec((IN_FEATURES, HIDDEN), lambda i: (0, 0)),
                pl.BlockSpec((1, HIDDEN), lambda i: (0, 0)),
                pl.BlockSpec((HIDDEN, OUT_PAD), lambda i: (0, 0)),
                pl.BlockSpec((1, OUT_PAD), lambda i: (0, 0)),
            ],
            out_specs=pl.BlockSpec((tm_eff, OUT_PAD), lambda i: (i, 0)),
        ),
        compiler_params=pltpu.CompilerParams(
            dimension_semantics=("parallel",),
            # TM=2048 f32 activation tiles (double-buffered) exceed v5e's
            # 16 MiB default scoped VMEM; raise the limit (still well under
            # physical VMEM on v5e/v6e/v7x; actual usage is ~24 MiB worst case).
            vmem_limit_bytes=64 * 1024 * 1024,
        ),
        cost_estimate=cost,
    )(x, w1_t, b1_2d, w2_t, b2_2d)

    # Strip the zero feature padding (kept lane-dense inside the kernel).
    return out_pad[:, :OUT_FEATURES]


def init_params(key):
    # Deterministic synthetic parameters with nn.Linear-style shapes and scale.
    k1, k2, k3, k4 = jax.random.split(key, 4)
    lim1 = 1.0 / jnp.sqrt(IN_FEATURES)
    lim2 = 1.0 / jnp.sqrt(HIDDEN)
    w1 = jax.random.uniform(k1, (HIDDEN, IN_FEATURES), jnp.float32, -lim1, lim1)
    b1 = jax.random.uniform(k2, (HIDDEN,), jnp.float32, -lim1, lim1)
    w2 = jax.random.uniform(k3, (OUT_FEATURES, HIDDEN), jnp.float32, -lim2, lim2)
    b2 = jax.random.uniform(k4, (OUT_FEATURES,), jnp.float32, -lim2, lim2)
    return w1, b1, w2, b2


if __name__ == "__main__":
    key = jax.random.PRNGKey(0)
    k_x, k_p = jax.random.split(key)

    # Word-prediction input: batch=2, 3 context words x 250-dim embedding each
    # -> reshapes to [2, 750] inside forward (just like the PyTorch module).
    inp = jax.random.normal(k_x, (2, 3, 250), dtype=jnp.float32)
    w1, b1, w2, b2 = init_params(k_p)

    out = pytorch_mlp_forward(inp, w1, b1, w2, b2)
    out = jax.block_until_ready(out)
    assert out.shape == (2, OUT_FEATURES)

    x = inp.reshape(-1, IN_FEATURES)

    # Reference 1: same bf16-operand / f32-accumulate math in plain JAX
    # (tight tolerance -> validates kernel structure exactly).
    h_q = jnp.maximum(
        jnp.dot(x.astype(jnp.bfloat16), w1.T.astype(jnp.bfloat16),
                preferred_element_type=jnp.float32) + b1, 0.0)
    ref_q = jnp.dot(h_q.astype(jnp.bfloat16), w2.T.astype(jnp.bfloat16),
                    preferred_element_type=jnp.float32) + b2
    assert jnp.allclose(out, ref_q, atol=2e-3, rtol=2e-3)

    # Reference 2: full-f32 PyTorch-equivalent math (loose tolerance: bf16
    # MXU operands trade ~0.5% error for 3-5x matmul throughput, per review).
    ref_f32 = jnp.maximum(x @ w1.T + b1, 0.0) @ w2.T + b2
    assert jnp.allclose(out, ref_f32, atol=3e-2, rtol=3e-2)

    print("KERNEL_OK")
</pallas_src>

<mosaic_0001>
module attributes {stable_mosaic.version = 11 : i64} {
  func.func @mlp_kernel(%arg0: i32, %arg1: memref<2x750xf32, #tpu.memory_space<vmem>>, %arg2: memref<750x256xbf16, #tpu.memory_space<vmem>>, %arg3: memref<1x256xf32, #tpu.memory_space<vmem>>, %arg4: memref<256x256xbf16, #tpu.memory_space<vmem>>, %arg5: memref<1x256xf32, #tpu.memory_space<vmem>>, %arg6: memref<2x256xf32, #tpu.memory_space<vmem>>) attributes {dimension_semantics = [#tpu.dimension_semantics<parallel>], iteration_bounds = array<i64: 1>, scalar_prefetch = 0 : i64, scratch_operands = 0 : i64, tpu.core_type = #tpu.core_type<tc>, window_params = [{transform_indices = @transform_0, window_bounds = array<i64: 2, 750>}, {pipeline_mode = #tpu.pipeline_mode<synchronous>, transform_indices = @transform_1, window_bounds = array<i64: 750, 256>}, {pipeline_mode = #tpu.pipeline_mode<synchronous>, transform_indices = @transform_2, window_bounds = array<i64: 1, 256>}, {pipeline_mode = #tpu.pipeline_mode<synchronous>, transform_indices = @transform_3, window_bounds = array<i64: 256, 256>}, {pipeline_mode = #tpu.pipeline_mode<synchronous>, transform_indices = @transform_4, window_bounds = array<i64: 1, 256>}, {transform_indices = @transform_5, window_bounds = array<i64: 2, 256>}]} {
    %c0 = arith.constant 0 : index
    %c0_0 = arith.constant 0 : index
    %0 = vector.load %arg1[%c0, %c0_0] : memref<2x750xf32, #tpu.memory_space<vmem>>, vector<2x750xf32>
    %1 = arith.truncf %0 : vector<2x750xf32> to vector<2x750xbf16>
    %c0_1 = arith.constant 0 : index
    %c0_2 = arith.constant 0 : index
    %2 = vector.load %arg2[%c0_1, %c0_2] : memref<750x256xbf16, #tpu.memory_space<vmem>>, vector<750x256xbf16>
    %cst = arith.constant dense<0.000000e+00> : vector<2x256xf32>
    %3 = tpu.matmul %1, %2, %cst {dimension_numbers = #tpu.dot_dimension_numbers<[1], [0], [0], [1], [0, 0, 1, 1], [], []>} : vector<2x750xbf16>, vector<750x256xbf16>, vector<2x256xf32> -> vector<2x256xf32>
    %c0_3 = arith.constant 0 : index
    %c0_4 = arith.constant 0 : index
    %4 = vector.load %arg3[%c0_3, %c0_4] : memref<1x256xf32, #tpu.memory_space<vmem>>, vector<1x256xf32>
    %5 = vector.broadcast %4 : vector<1x256xf32> to vector<2x256xf32>
    %6 = arith.addf %3, %5 : vector<2x256xf32>
    %cst_5 = arith.constant 0.000000e+00 : f32
    %7 = vector.broadcast %cst_5 : f32 to vector<2x256xf32>
    %8 = arith.maximumf %6, %7 : vector<2x256xf32>
    %9 = arith.truncf %8 : vector<2x256xf32> to vector<2x256xbf16>
    %c0_6 = arith.constant 0 : index
    %c0_7 = arith.constant 0 : index
    %10 = vector.load %arg4[%c0_6, %c0_7] : memref<256x256xbf16, #tpu.memory_space<vmem>>, vector<256x256xbf16>
    %cst_8 = arith.constant dense<0.000000e+00> : vector<2x256xf32>
    %11 = tpu.matmul %9, %10, %cst_8 {dimension_numbers = #tpu.dot_dimension_numbers<[1], [0], [0], [1], [0, 0, 1, 1], [], []>} : vector<2x256xbf16>, vector<256x256xbf16>, vector<2x256xf32> -> vector<2x256xf32>
    %c0_9 = arith.constant 0 : index
    %c0_10 = arith.constant 0 : index
    %12 = vector.load %arg5[%c0_9, %c0_10] : memref<1x256xf32, #tpu.memory_space<vmem>>, vector<1x256xf32>
    %13 = vector.broadcast %12 : vector<1x256xf32> to vector<2x256xf32>
    %14 = arith.addf %11, %13 : vector<2x256xf32>
    %c0_11 = arith.constant 0 : index
    %c0_12 = arith.constant 0 : index
    %15 = vector.load %arg6[%c0_11, %c0_12] : memref<2x256xf32, #tpu.memory_space<vmem>>, vector<2x256xf32>
    tpu.vector_store %arg6[%c0_11, %c0_12], %14 {strides = array<i32>} : memref<2x256xf32, #tpu.memory_space<vmem>>, vector<2x256xf32>,
    return
  }
  func.func @transform_0(%arg0: i32) -> (i32, i32) {
    %c0_i32 = arith.constant 0 : i32
    %c0_i32_0 = arith.constant 0 : i32
    return %arg0, %c0_i32 : i32, i32
  }
  func.func @transform_1(%arg0: i32) -> (i32, i32) {
    %c0_i32 = arith.constant 0 : i32
    %c0_i32_0 = arith.constant 0 : i32
    %c0_i32_1 = arith.constant 0 : i32
    return %c0_i32, %c0_i32_0 : i32, i32
  }
  func.func @transform_2(%arg0: i32) -> (i32, i32) {
    %c0_i32 = arith.constant 0 : i32
    %c0_i32_0 = arith.constant 0 : i32
    %c0_i32_1 = arith.constant 0 : i32
    return %c0_i32, %c0_i32_0 : i32, i32
  }
  func.func @transform_3(%arg0: i32) -> (i32, i32) {
    %c0_i32 = arith.constant 0 : i32
    %c0_i32_0 = arith.constant 0 : i32
    %c0_i32_1 = arith.constant 0 : i32
    return %c0_i32, %c0_i32_0 : i32, i32
  }
  func.func @transform_4(%arg0: i32) -> (i32, i32) {
    %c0_i32 = arith.constant 0 : i32
    %c0_i32_0 = arith.constant 0 : i32
    %c0_i32_1 = arith.constant 0 : i32
    return %c0_i32, %c0_i32_0 : i32, i32
  }
  func.func @transform_5(%arg0: i32) -> (i32, i32) {
    %c0_i32 = arith.constant 0 : i32
    %c0_i32_0 = arith.constant 0 : i32
    return %arg0, %c0_i32 : i32, i32
  }
}

</mosaic_0001>

<llo_original>
// kernel: pytorch_mlp_forward.1
$region0: #{pytorch_mlp_forward.1}
  #allocation0 [shape = 'u32[]', space=smem, size = 0x4, offset = 0x4, fixed_abs, tag = 'smem constant byte address 0x4 - core index']
  #allocation1 [shape = 'u32[144,128]{1,0:T(1,128)}', space=vmem, size = 0x12000, scoped, tag = 'internal scratch']
  %s0 = inlined_call_operand.hbm [shape: f32[2,750], index: 0, kind: input, shape index: {}]
  %s1 = inlined_call_operand.hbm [shape: bf16[750,256], index: 1, kind: input, shape index: {}]
  %s2 = inlined_call_operand.hbm [shape: f32[1,256], index: 2, kind: input, shape index: {}]
  %s3 = inlined_call_operand.hbm [shape: bf16[256,256], index: 3, kind: input, shape index: {}]
  %s4 = inlined_call_operand.hbm [shape: f32[1,256], index: 4, kind: input, shape index: {}]
  %s5 = inlined_call_operand.hbm [shape: f32[2,256], index: 5, kind: output, shape index: {}]
  %s6 = sld [smem:[#allocation0]]
  $region50: #{pytorch_mlp_forward.1} parent=0
    _
  %s8 = ssub.s32 1, %s6
  %s9 = scalar_select 0, %s8, %s6
  $region1: #{pytorch_mlp_forward.1} parent=0
    #allocation2 [shape = 'u8[6144]{0}', space=vmem, size = 0x1800, scoped, tag = 'input window, operand 0, single buffered']
    #allocation3 [shape = 's32[1]{0}', space=sflag, size = 0x4, scoped, tag = 'scoped memory for pytorch_mlp_forward.1']
    #allocation4 [shape = 's32[1]{0}', space=sflag, size = 0x4, scoped, tag = 'scoped memory for pytorch_mlp_forward.1']
    #allocation5 [shape = 'u8[385024]{0}', space=vmem, size = 0x5e000, scoped, tag = 'input window, operand 1, single buffered']
    #allocation6 [shape = 's32[1]{0}', space=sflag, size = 0x4, scoped, tag = 'scoped memory for pytorch_mlp_forward.1']
    #allocation7 [shape = 'u8[1024]{0}', space=vmem, size = 0x400, scoped, tag = 'input window, operand 2, single buffered']
    #allocation8 [shape = 'u8[131072]{0}', space=vmem, size = 0x20000, scoped, tag = 'input window, operand 3, single buffered']
    #allocation9 [shape = 's32[1]{0}', space=sflag, size = 0x4, scoped, tag = 'scoped memory for pytorch_mlp_forward.1']
    #allocation10 [shape = 'u8[1024]{0}', space=vmem, size = 0x400, scoped, tag = 'input window, operand 4, single buffered']
    #allocation11 [shape = 'u8[2048]{0}', space=vmem, size = 0x800, scoped, tag = 'output window, operand 0, single buffered']
    %10 = vsyncpa [#allocation3], 0
    %11 = vsyncpa [#allocation6], 0
    %12 = vsyncpa [#allocation9], 0
    %13 = vsyncpa [#allocation4], 0
    // Predicated region
    $region2: #{pytorch_mlp_forward.1} parent=1 // pred_check
      _
    $region3: #{pytorch_mlp_forward.1} parent=1 // pred_check_branch
      %15 = sbr.rel (0) target = $region5
    $region4: #{pytorch_mlp_forward.1} parent=1 // pred_region
      %s17 = ssub.s32 192, 192
      %18 = vsyncadd [#allocation3], %s17
      %s20 = sshll.u32 [#allocation2], 4
      %s21 = int_to_ptr.vmem [resolvable:$true] %s20
      %23 = dma.hbm_to_vmem [thread:$0]  %s0, 192, %s21, [#allocation3]
    $region5: #{pytorch_mlp_forward.1} parent=1 // pred_fallthru
      _
    // Predicated region
    $region6: #{pytorch_mlp_forward.1} parent=1 // pred_check
      _
    $region7: #{pytorch_mlp_forward.1} parent=1 // pred_check_branch
      %25 = sbr.rel (0) target = $region9
    $region8: #{pytorch_mlp_forward.1} parent=1 // pred_region
      %s27 = ssub.s32 12032, 12032
      %28 = vsyncadd [#allocation6], %s27
      %s29 = sshll.u32 [#allocation5], 4
      %s30 = int_to_ptr.vmem [resolvable:$true] %s29
      %35 = dma.hbm_to_vmem [thread:$0]  %s1, 12032, %s30, [#allocation6], 128, 128, 8
    $region9: #{pytorch_mlp_forward.1} parent=1 // pred_fallthru
      _
    // Predicated region
    $region10: #{pytorch_mlp_forward.1} parent=1 // pred_check
      _
    $region11: #{pytorch_mlp_forward.1} parent=1 // pred_check_branch
      %37 = sbr.rel (0) target = $region13
    $region12: #{pytorch_mlp_forward.1} parent=1 // pred_region
      %s39 = ssub.s32 32, 32
      %40 = vsyncadd [#allocation6], %s39
      %s42 = sshll.u32 [#allocation7], 4
      %s43 = int_to_ptr.vmem [resolvable:$true] %s42
      %45 = dma.hbm_to_vmem [thread:$0]  %s2, 32, %s43, [#allocation6]
    $region13: #{pytorch_mlp_forward.1} parent=1 // pred_fallthru
      _
    // Predicated region
    $region14: #{pytorch_mlp_forward.1} parent=1 // pred_check
      _
    $region15: #{pytorch_mlp_forward.1} parent=1 // pred_check_branch
      %47 = sbr.rel (0) target = $region17
    $region16: #{pytorch_mlp_forward.1} parent=1 // pred_region
      %s49 = ssub.s32 4096, 4096
      %50 = vsyncadd [#allocation9], %s49
      %s51 = sshll.u32 [#allocation8], 4
      %s52 = int_to_ptr.vmem [resolvable:$true] %s51
      %57 = dma.hbm_to_vmem [thread:$0]  %s3, 4096, %s52, [#allocation9], 128, 128, 8
    $region17: #{pytorch_mlp_forward.1} parent=1 // pred_fallthru
      _
    // Predicated region
    $region18: #{pytorch_mlp_forward.1} parent=1 // pred_check
      _
    $region19: #{pytorch_mlp_forward.1} parent=1 // pred_check_branch
      %59 = sbr.rel (0) target = $region21
    $region20: #{pytorch_mlp_forward.1} parent=1 // pred_region
      %s61 = ssub.s32 32, 32
      %62 = vsyncadd [#allocation9], %s61
      %s64 = sshll.u32 [#allocation10], 4
      %s65 = int_to_ptr.vmem [resolvable:$true] %s64
      %67 = dma.hbm_to_vmem [thread:$0]  %s4, 32, %s65, [#allocation9]
    $region21: #{pytorch_mlp_forward.1} parent=1 // pred_fallthru
      _
    // Predicated region
    $region22: #{pytorch_mlp_forward.1} parent=1 // pred_check
      _
    $region23: #{pytorch_mlp_forward.1} parent=1 // pred_check_branch
      %69 = sbr.rel (0) target = $region25
    $region24: #{pytorch_mlp_forward.1} parent=1 // pred_region
      %70 = dma.done [#allocation3], 192
    $region25: #{pytorch_mlp_forward.1} parent=1 // pred_fallthru
      _
    // Predicated region
    $region26: #{pytorch_mlp_forward.1} parent=1 // pred_check
      _
    $region27: #{pytorch_mlp_forward.1} parent=1 // pred_check_branch
      %72 = sbr.rel (0) target = $region29
    $region28: #{pytorch_mlp_forward.1} parent=1 // pred_region
      %73 = dma.done [#allocation6], 12032
    $region29: #{pytorch_mlp_forward.1} parent=1 // pred_fallthru
      _
    // Predicated region
    $region30: #{pytorch_mlp_forward.1} parent=1 // pred_check
      _
    $region31: #{pytorch_mlp_forward.1} parent=1 // pred_check_branch
      %75 = sbr.rel (0) target = $region33
    $region32: #{pytorch_mlp_forward.1} parent=1 // pred_region
      %76 = dma.done [#allocation6], 32
    $region33: #{pytorch_mlp_forward.1} parent=1 // pred_fallthru
      _
    // Predicated region
    $region34: #{pytorch_mlp_forward.1} parent=1 // pred_check
      _
    $region35: #{pytorch_mlp_forward.1} parent=1 // pred_check_branch
      %78 = sbr.rel (0) target = $region37
    $region36: #{pytorch_mlp_forward.1} parent=1 // pred_region
      %79 = dma.done [#allocation9], 4096
    $region37: #{pytorch_mlp_forward.1} parent=1 // pred_fallthru
      _
    // Predicated region
    $region38: #{pytorch_mlp_forward.1} parent=1 // pred_check
      _
    $region39: #{pytorch_mlp_forward.1} parent=1 // pred_check_branch
      %81 = sbr.rel (0) target = $region41
    $region40: #{pytorch_mlp_forward.1} parent=1 // pred_region
      %82 = dma.done [#allocation9], 32
    $region41: #{pytorch_mlp_forward.1} parent=1 // pred_fallthru
      _
    %v84 = vld [vmem:[#allocation2] sm:$0xff]
    %v85 = vld [vmem:[#allocation2 + $0x8] sm:$0xf]
    %v88 = vcombine.high %v84, %v84
    %v90 = vunpack.c.l.s4 1983009808
    %v91 = vunpack.c.0.s8 %v90
    %v92 = vlaneseq
    %v93 = vshrl.u32 %v92, 7
    %v94 = vsub.s32 %v91, %v93
    %v95 = vrot.slane %v84, %v94
    %v97 = vunpack.c.l.s4 1983009808
    %v98 = vunpack.c.0.s8 %v97
    %v99 = vlaneseq
    %v100 = vshrl.u32 %v99, 7
    %v101 = vsub.s32 %v98, %v100
    %v102 = vrot.slane %v88, %v101
    %v103 = vcombine.high %v95, %v95
    %v104 = vcombine.high %v102, %v102
    %v106 = vunpack.c.l.s4 1983009808
    %v107 = vunpack.c.0.s8 %v106
    %v108 = vlaneseq
    %v109 = vshrl.u32 %v108, 7
    %v110 = vsub.s32 %v107, %v109
    %v111 = vrot.slane %v85, %v110
    %v112 = vcombine.high %v111, %v111
    %v119 = vpack.c.bf16 %v95, %v95
    %v120 = vpack.c.bf16 %v103, %v103
    %v121 = vpack.c.bf16 %v102, %v102
    %v122 = vpack.c.bf16 %v104, %v104
    %v123 = vpack.c.bf16 %v111, %v111
    %v124 = vpack.c.bf16 %v112, %v112
    %v125 = vld [vmem:[#allocation5] sm:$0xff]
    %v126 = vld [vmem:[#allocation5 + $0x8] sm:$0xff]
    %v127 = vld [vmem:[#allocation5 + $0x10] sm:$0xff]
    %v128 = vld [vmem:[#allocation5 + $0x18] sm:$0xff]
    %v129 = vld [vmem:[#allocation5 + $0x20] sm:$0xff]
    %v130 = vld [vmem:[#allocation5 + $0x28] sm:$0xff]
    %v131 = vld [vmem:[#allocation5 + $0x30] sm:$0xff]
    %v132 = vld [vmem:[#allocation5 + $0x38] sm:$0xff]
    %v133 = vld [vmem:[#allocation5 + $0x40] sm:$0xff]
    %v134 = vld [vmem:[#allocation5 + $0x48] sm:$0xff]
    %v135 = vld [vmem:[#allocation5 + $0x50] sm:$0xff]
    %v136 = vld [vmem:[#allocation5 + $0x58] sm:$0xff]
    %v137 = vld [vmem:[#allocation5 + $0x60] sm:$0xff]
    %v138 = vld [vmem:[#allocation5 + $0x68] sm:$0xff]
    %v139 = vld [vmem:[#allocation5 + $0x70] sm:$0xff]
    %v140 = vld [vmem:[#allocation5 + $0x78] sm:$0xff]
    %v141 = vld [vmem:[#allocation5 + $0x80] sm:$0xff]
    %v142 = vld [vmem:[#allocation5 + $0x88] sm:$0xff]
    %v143 = vld [vmem:[#allocation5 + $0x90] sm:$0xff]
    %v144 = vld [vmem:[#allocation5 + $0x98] sm:$0xff]
    %v145 = vld [vmem:[#allocation5 + $0xa0] sm:$0xff]
    %v146 = vld [vmem:[#allocation5 + $0xa8] sm:$0xff]
    %v147 = vld [vmem:[#allocation5 + $0xb0] sm:$0xff]
    %v148 = vld [vmem:[#allocation5 + $0xb8] sm:$0xff]
    %v149 = vld [vmem:[#allocation5 + $0xc0] sm:$0xff]
    %v150 = vld [vmem:[#allocation5 + $0xc8] sm:$0xff]
    %v151 = vld [vmem:[#allocation5 + $0xd0] sm:$0xff]
    %v152 = vld [vmem:[#allocation5 + $0xd8] sm:$0xff]
    %v153 = vld [vmem:[#allocation5 + $0xe0] sm:$0xff]
    %v154 = vld [vmem:[#allocation5 + $0xe8] sm:$0xff]
    %v155 = vld [vmem:[#allocation5 + $0xf0] sm:$0xff]
    %v156 = vld [vmem:[#allocation5 + $0xf8] sm:$0xff]
    %v157 = vld [vmem:[#allocation5 + $0x100] sm:$0xff]
    %v158 = vld [vmem:[#allocation5 + $0x108] sm:$0xff]
    %v159 = vld [vmem:[#allocation5 + $0x110] sm:$0xff]
    %v160 = vld [vmem:[#allocation5 + $0x118] sm:$0xff]
    %v161 = vld [vmem:[#allocation5 + $0x120] sm:$0xff]
    %v162 = vld [vmem:[#allocation5 + $0x128] sm:$0xff]
    %v163 = vld [vmem:[#allocation5 + $0x130] sm:$0xff]
    %v164 = vld [vmem:[#allocation5 + $0x138] sm:$0xff]
    %v165 = vld [vmem:[#allocation5 + $0x140] sm:$0xff]
    %v166 = vld [vmem:[#allocation5 + $0x148] sm:$0xff]
    %v167 = vld [vmem:[#allocation5 + $0x150] sm:$0xff]
    %v168 = vld [vmem:[#allocation5 + $0x158] sm:$0xff]
    %v169 = vld [vmem:[#allocation5 + $0x160] sm:$0xff]
    %v170 = vld [vmem:[#allocation5 + $0x168] sm:$0xff]
    %v171 = vld [vmem:[#allocation5 + $0x170] sm:$0xff]
    %v172 = vld [vmem:[#allocation5 + $0x178] sm:$0xff]
    %v173 = vld [vmem:[#allocation5 + $0x180] sm:$0xff]
    %v174 = vld [vmem:[#allocation5 + $0x188] sm:$0xff]
    %v175 = vld [vmem:[#allocation5 + $0x190] sm:$0xff]
    %v176 = vld [vmem:[#allocation5 + $0x198] sm:$0xff]
    %v177 = vld [vmem:[#allocation5 + $0x1a0] sm:$0xff]
    %v178 = vld [vmem:[#allocation5 + $0x1a8] sm:$0xff]
    %v179 = vld [vmem:[#allocation5 + $0x1b0] sm:$0xff]
    %v180 = vld [vmem:[#allocation5 + $0x1b8] sm:$0xff]
    %v181 = vld [vmem:[#allocation5 + $0x1c0] sm:$0xff]
    %v182 = vld [vmem:[#allocation5 + $0x1c8] sm:$0xff]
    %v183 = vld [vmem:[#allocation5 + $0x1d0] sm:$0xff]
    %v184 = vld [vmem:[#allocation5 + $0x1d8] sm:$0xff]
    %v185 = vld [vmem:[#allocation5 + $0x1e0] sm:$0xff]
    %v186 = vld [vmem:[#allocation5 + $0x1e8] sm:$0xff]
    %v187 = vld [vmem:[#allocation5 + $0x1f0] sm:$0xff]
    %v188 = vld [vmem:[#allocation5 + $0x1f8] sm:$0xff]
    %v189 = vld [vmem:[#allocation5 + $0x200] sm:$0xff]
    %v190 = vld [vmem:[#allocation5 + $0x208] sm:$0xff]
    %v191 = vld [vmem:[#allocation5 + $0x210] sm:$0xff]
    %v192 = vld [vmem:[#allocation5 + $0x218] sm:$0xff]
    %v193 = vld [vmem:[#allocation5 + $0x220] sm:$0xff]
    %v194 = vld [vmem:[#allocation5 + $0x228] sm:$0xff]
    %v195 = vld [vmem:[#allocation5 + $0x230] sm:$0xff]
    %v196 = vld [vmem:[#allocation5 + $0x238] sm:$0xff]
    %v197 = vld [vmem:[#allocation5 + $0x240] sm:$0xff]
    %v198 = vld [vmem:[#allocation5 + $0x248] sm:$0xff]
    %v199 = vld [vmem:[#allocation5 + $0x250] sm:$0xff]
    %v200 = vld [vmem:[#allocation5 + $0x258] sm:$0xff]
    %v201 = vld [vmem:[#allocation5 + $0x260] sm:$0xff]
    %v202 = vld [vmem:[#allocation5 + $0x268] sm:$0xff]
    %v203 = vld [vmem:[#allocation5 + $0x270] sm:$0xff]
    %v204 = vld [vmem:[#allocation5 + $0x278] sm:$0xff]
    %v205 = vld [vmem:[#allocation5 + $0x280] sm:$0xff]
    %v206 = vld [vmem:[#allocation5 + $0x288] sm:$0xff]
    %v207 = vld [vmem:[#allocation5 + $0x290] sm:$0xff]
    %v208 = vld [vmem:[#allocation5 + $0x298] sm:$0xff]
    %v209 = vld [vmem:[#allocation5 + $0x2a0] sm:$0xff]
    %v210 = vld [vmem:[#allocation5 + $0x2a8] sm:$0xff]
    %v211 = vld [vmem:[#allocation5 + $0x2b0] sm:$0xff]
    %v212 = vld [vmem:[#allocation5 + $0x2b8] sm:$0xff]
    %v213 = vld [vmem:[#allocation5 + $0x2c0] sm:$0xff]
    %v214 = vld [vmem:[#allocation5 + $0x2c8] sm:$0xff]
    %v215 = vld [vmem:[#allocation5 + $0x2d0] sm:$0xff]
    %v216 = vld [vmem:[#allocation5 + $0x2d8] sm:$0xff]
    %v217 = vld [vmem:[#allocation5 + $0x2e0] sm:$0xff]
    %v218 = vld [vmem:[#allocation5 + $0x2e8] sm:$0x77]
    %v219 = vld [vmem:[#allocation7] sm:$0x3]
    %v221 = vlaneseq
    %v222 = vshrl.u32 %v221, 7
    %v223 = vsub.s32 0, %v222
    %v224 = vrot.slane %v219, %v223
    %v225 = vlaneseq
    %v226 = vshrl.u32 %v225, 7
    %v227 = vsub.s32 1, %v226
    %v228 = vrot.slane %v219, %v227
    %v325 = vunpack.c.l.b16 %v125
    %v326 = vunpack.c.h.b16 %v125
    %v327 = vunpack.c.l.b16 %v126
    %v328 = vunpack.c.h.b16 %v126
    %v329 = vunpack.c.l.b16 %v127
    %v330 = vunpack.c.h.b16 %v127
    %v331 = vunpack.c.l.b16 %v128
    %v332 = vunpack.c.h.b16 %v128
    %v333 = vunpack.c.l.b16 %v129
    %v334 = vunpack.c.h.b16 %v129
    %v335 = vunpack.c.l.b16 %v130
    %v336 = vunpack.c.h.b16 %v130
    %v337 = vunpack.c.l.b16 %v131
    %v338 = vunpack.c.h.b16 %v131
    %v339 = vunpack.c.l.b16 %v132
    %v340 = vunpack.c.h.b16 %v132
    %v341 = vunpack.c.l.b16 %v133
    %v342 = vunpack.c.h.b16 %v133
    %v343 = vunpack.c.l.b16 %v134
    %v344 = vunpack.c.h.b16 %v134
    %v345 = vunpack.c.l.b16 %v135
    %v346 = vunpack.c.h.b16 %v135
    %v347 = vunpack.c.l.b16 %v136
    %v348 = vunpack.c.h.b16 %v136
    %v349 = vunpack.c.l.b16 %v137
    %v350 = vunpack.c.h.b16 %v137
    %v351 = vunpack.c.l.b16 %v138
    %v352 = vunpack.c.h.b16 %v138
    %v353 = vunpack.c.l.b16 %v139
    %v354 = vunpack.c.h.b16 %v139
    %v355 = vunpack.c.l.b16 %v140
    %v356 = vunpack.c.h.b16 %v140
    %v357 = vunpack.c.l.b16 %v141
    %v358 = vunpack.c.h.b16 %v141
    %v359 = vunpack.c.l.b16 %v142
    %v360 = vunpack.c.h.b16 %v142
    %v361 = vunpack.c.l.b16 %v143
    %v362 = vunpack.c.h.b16 %v143
    %v363 = vunpack.c.l.b16 %v144
    %v364 = vunpack.c.h.b16 %v144
    %v365 = vunpack.c.l.b16 %v145
    %v366 = vunpack.c.h.b16 %v145
    %v367 = vunpack.c.l.b16 %v146
    %v368 = vunpack.c.h.b16 %v146
    %v369 = vunpack.c.l.b16 %v147
    %v370 = vunpack.c.h.b16 %v147
    %v371 = vunpack.c.l.b16 %v148
    %v372 = vunpack.c.h.b16 %v148
    %v373 = vunpack.c.l.b16 %v149
    %v374 = vunpack.c.h.b16 %v149
    %v375 = vunpack.c.l.b16 %v150
    %v376 = vunpack.c.h.b16 %v150
    %v377 = vunpack.c.l.b16 %v151
    %v378 = vunpack.c.h.b16 %v151
    %v379 = vunpack.c.l.b16 %v152
    %v380 = vunpack.c.h.b16 %v152
    %v381 = vunpack.c.l.b16 %v153
    %v382 = vunpack.c.h.b16 %v153
    %v383 = vunpack.c.l.b16 %v154
    %v384 = vunpack.c.h.b16 %v154
    %v385 = vunpack.c.l.b16 %v155
    %v386 = vunpack.c.h.b16 %v155
    %v387 = vunpack.c.l.b16 %v156
    %v388 = vunpack.c.h.b16 %v156
    %v389 = vunpack.c.l.b16 %v157
    %v390 = vunpack.c.h.b16 %v157
    %v391 = vunpack.c.l.b16 %v158
    %v392 = vunpack.c.h.b16 %v158
    %v393 = vunpack.c.l.b16 %v159
    %v394 = vunpack.c.h.b16 %v159
    %v395 = vunpack.c.l.b16 %v160
    %v396 = vunpack.c.h.b16 %v160
    %v397 = vunpack.c.l.b16 %v161
    %v398 = vunpack.c.h.b16 %v161
    %v399 = vunpack.c.l.b16 %v162
    %v400 = vunpack.c.h.b16 %v162
    %v401 = vunpack.c.l.b16 %v163
    %v402 = vunpack.c.h.b16 %v163
    %v403 = vunpack.c.l.b16 %v164
    %v404 = vunpack.c.h.b16 %v164
    %v405 = vunpack.c.l.b16 %v165
    %v406 = vunpack.c.h.b16 %v165
    %v407 = vunpack.c.l.b16 %v166
    %v408 = vunpack.c.h.b16 %v166
    %v409 = vunpack.c.l.b16 %v167
    %v410 = vunpack.c.h.b16 %v167
    %v411 = vunpack.c.l.b16 %v168
    %v412 = vunpack.c.h.b16 %v168
    %v413 = vunpack.c.l.b16 %v169
    %v414 = vunpack.c.h.b16 %v169
    %v415 = vunpack.c.l.b16 %v170
    %v416 = vunpack.c.h.b16 %v170
    %v417 = vunpack.c.l.b16 %v171
    %v418 = vunpack.c.h.b16 %v171
    %v419 = vunpack.c.l.b16 %v172
    %v420 = vunpack.c.h.b16 %v172
    %v421 = vunpack.c.l.b16 %v173
    %v422 = vunpack.c.h.b16 %v173
    %v423 = vunpack.c.l.b16 %v174
    %v424 = vunpack.c.h.b16 %v174
    %v425 = vunpack.c.l.b16 %v175
    %v426 = vunpack.c.h.b16 %v175
    %v427 = vunpack.c.l.b16 %v176
    %v428 = vunpack.c.h.b16 %v176
    %v429 = vunpack.c.l.b16 %v177
    %v430 = vunpack.c.h.b16 %v177
    %v431 = vunpack.c.l.b16 %v178
    %v432 = vunpack.c.h.b16 %v178
    %v433 = vunpack.c.l.b16 %v179
    %v434 = vunpack.c.h.b16 %v179
    %v435 = vunpack.c.l.b16 %v180
    %v436 = vunpack.c.h.b16 %v180
    %v437 = vunpack.c.l.b16 %v181
    %v438 = vunpack.c.h.b16 %v181
    %v439 = vunpack.c.l.b16 %v182
    %v440 = vunpack.c.h.b16 %v182
    %v441 = vunpack.c.l.b16 %v183
    %v442 = vunpack.c.h.b16 %v183
    %v443 = vunpack.c.l.b16 %v184
    %v444 = vunpack.c.h.b16 %v184
    %v445 = vunpack.c.l.b16 %v185
    %v446 = vunpack.c.h.b16 %v185
    %v447 = vunpack.c.l.b16 %v186
    %v448 = vunpack.c.h.b16 %v186
    %v449 = vunpack.c.l.b16 %v187
    %v450 = vunpack.c.h.b16 %v187
    %v451 = vunpack.c.l.b16 %v188
    %v452 = vunpack.c.h.b16 %v188
    %v453 = vunpack.c.l.b16 %v189
    %v454 = vunpack.c.h.b16 %v189
    %v455 = vunpack.c.l.b16 %v190
    %v456 = vunpack.c.h.b16 %v190
    %v457 = vunpack.c.l.b16 %v191
    %v458 = vunpack.c.h.b16 %v191
    %v459 = vunpack.c.l.b16 %v192
    %v460 = vunpack.c.h.b16 %v192
    %v461 = vunpack.c.l.b16 %v193
    %v462 = vunpack.c.h.b16 %v193
    %v463 = vunpack.c.l.b16 %v194
    %v464 = vunpack.c.h.b16 %v194
    %v465 = vunpack.c.l.b16 %v195
    %v466 = vunpack.c.h.b16 %v195
    %v467 = vunpack.c.l.b16 %v196
    %v468 = vunpack.c.h.b16 %v196
    %v469 = vunpack.c.l.b16 %v197
    %v470 = vunpack.c.h.b16 %v197
    %v471 = vunpack.c.l.b16 %v198
    %v472 = vunpack.c.h.b16 %v198
    %v473 = vunpack.c.l.b16 %v199
    %v474 = vunpack.c.h.b16 %v199
    %v475 = vunpack.c.l.b16 %v200
    %v476 = vunpack.c.h.b16 %v200
    %v477 = vunpack.c.l.b16 %v201
    %v478 = vunpack.c.h.b16 %v201
    %v479 = vunpack.c.l.b16 %v202
    %v480 = vunpack.c.h.b16 %v202
    %v481 = vunpack.c.l.b16 %v203
    %v482 = vunpack.c.h.b16 %v203
    %v483 = vunpack.c.l.b16 %v204
    %v484 = vunpack.c.h.b16 %v204
    %v485 = vunpack.c.l.b16 %v205
    %v486 = vunpack.c.h.b16 %v205
    %v487 = vunpack.c.l.b16 %v206
    %v488 = vunpack.c.h.b16 %v206
    %v489 = vunpack.c.l.b16 %v207
    %v490 = vunpack.c.h.b16 %v207
    %v491 = vunpack.c.l.b16 %v208
    %v492 = vunpack.c.h.b16 %v208
    %v493 = vunpack.c.l.b16 %v209
    %v494 = vunpack.c.h.b16 %v209
    %v495 = vunpack.c.l.b16 %v210
    %v496 = vunpack.c.h.b16 %v210
    %v497 = vunpack.c.l.b16 %v211
    %v498 = vunpack.c.h.b16 %v211
    %v499 = vunpack.c.l.b16 %v212
    %v500 = vunpack.c.h.b16 %v212
    %v501 = vunpack.c.l.b16 %v213
    %v502 = vunpack.c.h.b16 %v213
    %v503 = vunpack.c.l.b16 %v214
    %v504 = vunpack.c.h.b16 %v214
    %v505 = vunpack.c.l.b16 %v215
    %v506 = vunpack.c.h.b16 %v215
    %v507 = vunpack.c.l.b16 %v216
    %v508 = vunpack.c.h.b16 %v216
    %v509 = vunpack.c.l.b16 %v217
    %v510 = vunpack.c.h.b16 %v217
    %v511 = vunpack.c.l.b16 %v218
    %v512 = vunpack.c.h.b16 %v218
    %v513 = vpack.c.b16 %v327, %v325
    %v514 = vpack.c.b16 %v328, %v326
    %v515 = vpack.c.b16 %v331, %v329
    %v516 = vpack.c.b16 %v332, %v330
    %v517 = vpack.c.b16 %v335, %v333
    %v518 = vpack.c.b16 %v336, %v334
    %v519 = vpack.c.b16 %v339, %v337
    %v520 = vpack.c.b16 %v340, %v338
    %v521 = vpack.c.b16 %v343, %v341
    %v522 = vpack.c.b16 %v344, %v342
    %v523 = vpack.c.b16 %v347, %v345
    %v524 = vpack.c.b16 %v348, %v346
    %v525 = vpack.c.b16 %v351, %v349
    %v526 = vpack.c.b16 %v352, %v350
    %v527 = vpack.c.b16 %v355, %v353
    %v528 = vpack.c.b16 %v356, %v354
    %v529 = vpack.c.b16 %v359, %v357
    %v530 = vpack.c.b16 %v360, %v358
    %v531 = vpack.c.b16 %v363, %v361
    %v532 = vpack.c.b16 %v364, %v362
    %v533 = vpack.c.b16 %v367, %v365
    %v534 = vpack.c.b16 %v368, %v366
    %v535 = vpack.c.b16 %v371, %v369
    %v536 = vpack.c.b16 %v372, %v370
    %v537 = vpack.c.b16 %v375, %v373
    %v538 = vpack.c.b16 %v376, %v374
    %v539 = vpack.c.b16 %v379, %v377
    %v540 = vpack.c.b16 %v380, %v378
    %v541 = vpack.c.b16 %v383, %v381
    %v542 = vpack.c.b16 %v384, %v382
    %v543 = vpack.c.b16 %v387, %v385
    %v544 = vpack.c.b16 %v388, %v386
    %v545 = vpack.c.b16 %v391, %v389
    %v546 = vpack.c.b16 %v392, %v390
    %v547 = vpack.c.b16 %v395, %v393
    %v548 = vpack.c.b16 %v396, %v394
    %v549 = vpack.c.b16 %v399, %v397
    %v550 = vpack.c.b16 %v400, %v398
    %v551 = vpack.c.b16 %v403, %v401
    %v552 = vpack.c.b16 %v404, %v402
    %v553 = vpack.c.b16 %v407, %v405
    %v554 = vpack.c.b16 %v408, %v406
    %v555 = vpack.c.b16 %v411, %v409
    %v556 = vpack.c.b16 %v412, %v410
    %v557 = vpack.c.b16 %v415, %v413
    %v558 = vpack.c.b16 %v416, %v414
    %v559 = vpack.c.b16 %v419, %v417
    %v560 = vpack.c.b16 %v420, %v418
    %v561 = vpack.c.b16 %v423, %v421
    %v562 = vpack.c.b16 %v424, %v422
    %v563 = vpack.c.b16 %v427, %v425
    %v564 = vpack.c.b16 %v428, %v426
    %v565 = vpack.c.b16 %v431, %v429
    %v566 = vpack.c.b16 %v432, %v430
    %v567 = vpack.c.b16 %v435, %v433
    %v568 = vpack.c.b16 %v436, %v434
    %v569 = vpack.c.b16 %v439, %v437
    %v570 = vpack.c.b16 %v440, %v438
    %v571 = vpack.c.b16 %v443, %v441
    %v572 = vpack.c.b16 %v444, %v442
    %v573 = vpack.c.b16 %v447, %v445
    %v574 = vpack.c.b16 %v448, %v446
    %v575 = vpack.c.b16 %v451, %v449
    %v576 = vpack.c.b16 %v452, %v450
    %v577 = vpack.c.b16 %v455, %v453
    %v578 = vpack.c.b16 %v456, %v454
    %v579 = vpack.c.b16 %v459, %v457
    %v580 = vpack.c.b16 %v460, %v458
    %v581 = vpack.c.b16 %v463, %v461
    %v582 = vpack.c.b16 %v464, %v462
    %v583 = vpack.c.b16 %v467, %v465
    %v584 = vpack.c.b16 %v468, %v466
    %v585 = vpack.c.b16 %v471, %v469
    %v586 = vpack.c.b16 %v472, %v470
    %v587 = vpack.c.b16 %v475, %v473
    %v588 = vpack.c.b16 %v476, %v474
    %v589 = vpack.c.b16 %v479, %v477
    %v590 = vpack.c.b16 %v480, %v478
    %v591 = vpack.c.b16 %v483, %v481
    %v592 = vpack.c.b16 %v484, %v482
    %v593 = vpack.c.b16 %v487, %v485
    %v594 = vpack.c.b16 %v488, %v486
    %v595 = vpack.c.b16 %v491, %v489
    %v596 = vpack.c.b16 %v492, %v490
    %v597 = vpack.c.b16 %v495, %v493
    %v598 = vpack.c.b16 %v496, %v494
    %v599 = vpack.c.b16 %v499, %v497
    %v600 = vpack.c.b16 %v500, %v498
    %v601 = vpack.c.b16 %v503, %v501
    %v602 = vpack.c.b16 %v504, %v502
    %v603 = vpack.c.b16 %v507, %v505
    %v604 = vpack.c.b16 %v508, %v506
    %v605 = vpack.c.b16 %v511, %v509
    %v606 = vpack.c.b16 %v512, %v510
    %vm699 = vcmask 900096
    %v701 = vsel %vm699, %v124, 0
    %vm703 = vcmask 1046528
    %v705 = vsel %vm703, %v605, 0
    %v708 = vsel %vm703, %v606, 0
    %710 = vmatprep.subr.bf16.mxu0 %v514
    %711 = vmatpush1.bf16.msra.mxu0 %v513
    %712 = vmatprep.subr.bf16.mxu0 %v516
    %713 = vmatpush1.bf16.msra.mxu0 %v515
    %714 = vmatprep.subr.bf16.mxu0 %v518
    %715 = vmatpush1.bf16.msra.mxu0 %v517
    %716 = vmatprep.subr.bf16.mxu0 %v520
    %717 = vmatpush1.bf16.msra.mxu0 %v519
    %718 = vmatprep.subr.bf16.mxu0 %v522
    %719 = vmatpush1.bf16.msra.mxu0 %v521
    %720 = vmatprep.subr.bf16.mxu0 %v524
    %721 = vmatpush1.bf16.msra.mxu0 %v523
    %722 = vmatprep.subr.bf16.mxu0 %v526
    %723 = vmatpush1.bf16.msra.mxu0 %v525
    %724 = vmatprep.subr.bf16.mxu0 %v528
    %725 = vmatpush1.bf16.msra.mxu0 %v527
    %726 = vmatprep.subr.bf16.mxu0 %v530
    %727 = vmatpush1.bf16.msra.mxu0 %v529
    %728 = vmatprep.subr.bf16.mxu0 %v532
    %729 = vmatpush1.bf16.msra.mxu0 %v531
    %730 = vmatprep.subr.bf16.mxu0 %v534
    %731 = vmatpush1.bf16.msra.mxu0 %v533
    %732 = vmatprep.subr.bf16.mxu0 %v536
    %733 = vmatpush1.bf16.msra.mxu0 %v535
    %734 = vmatprep.subr.bf16.mxu0 %v538
    %735 = vmatpush1.bf16.msra.mxu0 %v537
    %736 = vmatprep.subr.bf16.mxu0 %v540
    %737 = vmatpush1.bf16.msra.mxu0 %v539
    %738 = vmatprep.subr.bf16.mxu0 %v542
    %739 = vmatpush1.bf16.msra.mxu0 %v541
    %740 = vmatprep.subr.bf16.mxu0 %v544
    %741 = vmatpush1.bf16.msra.mxu0 %v543
    %742 = vmatprep.mubr.bf16.mxu0 %v120
    %743 = vmatmul.mubr.bf16.gmra.mrb[0].mxu0 %v119
    %v744 = vpop.f32.mrb[0].mxu0
    %v745 = vadd.f32 %v224, %v744
    %v746 = vpop.f32.mrb[0].mxu0
    %v747 = vadd.f32 %v228, %v746
    %v748 = vpop.f32.mrb[0].mxu0
    %v749 = vpop.f32.mrb[0].mxu0
    %750 = vdwg.mxu0
    %751 = vmatprep.subr.bf16.mxu0 %v546
    %752 = vmatpush1.bf16.msra.mxu0 %v545
    %753 = vmatprep.subr.bf16.mxu0 %v548
    %754 = vmatpush1.bf16.msra.mxu0 %v547
    %755 = vmatprep.subr.bf16.mxu0 %v550
    %756 = vmatpush1.bf16.msra.mxu0 %v549
    %757 = vmatprep.subr.bf16.mxu0 %v552
    %758 = vmatpush1.bf16.msra.mxu0 %v551
    %759 = vmatprep.subr.bf16.mxu0 %v554
    %760 = vmatpush1.bf16.msra.mxu0 %v553
    %761 = vmatprep.subr.bf16.mxu0 %v556
    %762 = vmatpush1.bf16.msra.mxu0 %v555
    %763 = vmatprep.subr.bf16.mxu0 %v558
    %764 = vmatpush1.bf16.msra.mxu0 %v557
    %765 = vmatprep.subr.bf16.mxu0 %v560
    %766 = vmatpush1.bf16.msra.mxu0 %v559
    %767 = vmatprep.subr.bf16.mxu0 %v562
    %768 = vmatpush1.bf16.msra.mxu0 %v561
    %769 = vmatprep.subr.bf16.mxu0 %v564
    %770 = vmatpush1.bf16.msra.mxu0 %v563
    %771 = vmatprep.subr.bf16.mxu0 %v566
    %772 = vmatpush1.bf16.msra.mxu0 %v565
    %773 = vmatprep.subr.bf16.mxu0 %v568
    %774 = vmatpush1.bf16.msra.mxu0 %v567
    %775 = vmatprep.subr.bf16.mxu0 %v570
    %776 = vmatpush1.bf16.msra.mxu0 %v569
    %777 = vmatprep.subr.bf16.mxu0 %v572
    %778 = vmatpush1.bf16.msra.mxu0 %v571
    %779 = vmatprep.subr.bf16.mxu0 %v574
    %780 = vmatpush1.bf16.msra.mxu0 %v573
    %781 = vmatprep.subr.bf16.mxu0 %v576
    %782 = vmatpush1.bf16.msra.mxu0 %v575
    %783 = vmatprep.mubr.bf16.mxu0 %v122
    %784 = vmatmul.mubr.bf16.gmra.mrb[0].mxu0 %v121
    %v785 = vpop.f32.mrb[0].mxu0
    %v786 = vadd.f32 %v745, %v785
    %v787 = vpop.f32.mrb[0].mxu0
    %v788 = vadd.f32 %v747, %v787
    %v789 = vpop.f32.mrb[0].mxu0
    %v790 = vpop.f32.mrb[0].mxu0
    %791 = vdwg.mxu0
    %792 = vmatprep.subr.bf16.mxu0 %v578
    %793 = vmatpush1.bf16.msra.mxu0 %v577
    %794 = vmatprep.subr.bf16.mxu0 %v580
    %795 = vmatpush1.bf16.msra.mxu0 %v579
    %796 = vmatprep.subr.bf16.mxu0 %v582
    %797 = vmatpush1.bf16.msra.mxu0 %v581
    %798 = vmatprep.subr.bf16.mxu0 %v584
    %799 = vmatpush1.bf16.msra.mxu0 %v583
    %800 = vmatprep.subr.bf16.mxu0 %v586
    %801 = vmatpush1.bf16.msra.mxu0 %v585
    %802 = vmatprep.subr.bf16.mxu0 %v588
    %803 = vmatpush1.bf16.msra.mxu0 %v587
    %804 = vmatprep.subr.bf16.mxu0 %v590
    %805 = vmatpush1.bf16.msra.mxu0 %v589
    %806 = vmatprep.subr.bf16.mxu0 %v592
    %807 = vmatpush1.bf16.msra.mxu0 %v591
    %808 = vmatprep.subr.bf16.mxu0 %v594
    %809 = vmatpush1.bf16.msra.mxu0 %v593
    %810 = vmatprep.subr.bf16.mxu0 %v596
    %811 = vmatpush1.bf16.msra.mxu0 %v595
    %812 = vmatprep.subr.bf16.mxu0 %v598
    %813 = vmatpush1.bf16.msra.mxu0 %v597
    %814 = vmatprep.subr.bf16.mxu0 %v600
    %815 = vmatpush1.bf16.msra.mxu0 %v599
    %816 = vmatprep.subr.bf16.mxu0 %v602
    %817 = vmatpush1.bf16.msra.mxu0 %v601
    %818 = vmatprep.subr.bf16.mxu0 %v604
    %819 = vmatpush1.bf16.msra.mxu0 %v603
    %820 = vmatprep.subr.bf16.mxu0 %v708
    %821 = vmatpush1.bf16.msra.mxu0 %v705
    %822 = vmatprep.subr.bf16.mxu0 0
    %823 = vmatpush1.bf16.msra.mxu0 0
    %824 = vmatprep.mubr.bf16.mxu0 %v701
    %825 = vmatmul.mubr.bf16.gmra.mrb[0].mxu0 %v123
    %v826 = vpop.f32.mrb[0].mxu0
    %v827 = vadd.f32 %v786, %v826
    %v828 = vpop.f32.mrb[0].mxu0
    %v829 = vadd.f32 %v788, %v828
    %v830 = vpop.f32.mrb[0].mxu0
    %v831 = vpop.f32.mrb[0].mxu0
    %832 = vdwg.mxu0
    %v833 = vmax.f32 %v827, 0.0
    %v834 = vmax.f32 %v829, 0.0
    %v835 = vpack.c.bf16 %v833, %v833
    %v836 = vpack.c.bf16 %v834, %v834
    %v837 = vld [vmem:[#allocation8] sm:$0xff]
    %v838 = vld [vmem:[#allocation8 + $0x8] sm:$0xff]
    %v839 = vld [vmem:[#allocation8 + $0x10] sm:$0xff]
    %v840 = vld [vmem:[#allocation8 + $0x18] sm:$0xff]
    %v841 = vld [vmem:[#allocation8 + $0x20] sm:$0xff]
    %v842 = vld [vmem:[#allocation8 + $0x28] sm:$0xff]
    %v843 = vld [vmem:[#allocation8 + $0x30] sm:$0xff]
    %v844 = vld [vmem:[#allocation8 + $0x38] sm:$0xff]
    %v845 = vld [vmem:[#allocation8 + $0x40] sm:$0xff]
    %v846 = vld [vmem:[#allocation8 + $0x48] sm:$0xff]
    %v847 = vld [vmem:[#allocation8 + $0x50] sm:$0xff]
    %v848 = vld [vmem:[#allocation8 + $0x58] sm:$0xff]
    %v849 = vld [vmem:[#allocation8 + $0x60] sm:$0xff]
    %v850 = vld [vmem:[#allocation8 + $0x68] sm:$0xff]
    %v851 = vld [vmem:[#allocation8 + $0x70] sm:$0xff]
    %v852 = vld [vmem:[#allocation8 + $0x78] sm:$0xff]
    %v853 = vld [vmem:[#allocation8 + $0x80] sm:$0xff]
    %v854 = vld [vmem:[#allocation8 + $0x88] sm:$0xff]
    %v855 = vld [vmem:[#allocation8 + $0x90] sm:$0xff]
    %v856 = vld [vmem:[#allocation8 + $0x98] sm:$0xff]
    %v857 = vld [vmem:[#allocation8 + $0xa0] sm:$0xff]
    %v858 = vld [vmem:[#allocation8 + $0xa8] sm:$0xff]
    %v859 = vld [vmem:[#allocation8 + $0xb0] sm:$0xff]
    %v860 = vld [vmem:[#allocation8 + $0xb8] sm:$0xff]
    %v861 = vld [vmem:[#allocation8 + $0xc0] sm:$0xff]
    %v862 = vld [vmem:[#allocation8 + $0xc8] sm:$0xff]
    %v863 = vld [vmem:[#allocation8 + $0xd0] sm:$0xff]
    %v864 = vld [vmem:[#allocation8 + $0xd8] sm:$0xff]
    %v865 = vld [vmem:[#allocation8 + $0xe0] sm:$0xff]
    %v866 = vld [vmem:[#allocation8 + $0xe8] sm:$0xff]
    %v867 = vld [vmem:[#allocation8 + $0xf0] sm:$0xff]
    %v868 = vld [vmem:[#allocation8 + $0xf8] sm:$0xff]
    %v869 = vld [vmem:[#allocation10] sm:$0x3]
    %v871 = vlaneseq
    %v872 = vshrl.u32 %v871, 7
    %v873 = vsub.s32 0, %v872
    %v874 = vrot.slane %v869, %v873
    %v875 = vlaneseq
    %v876 = vshrl.u32 %v875, 7
    %v877 = vsub.s32 1, %v876
    %v878 = vrot.slane %v869, %v877
    %v913 = vunpack.c.l.b16 %v837
    %v914 = vunpack.c.h.b16 %v837
    %v915 = vunpack.c.l.b16 %v838
    %v916 = vunpack.c.h.b16 %v838
    %v917 = vunpack.c.l.b16 %v839
    %v918 = vunpack.c.h.b16 %v839
    %v919 = vunpack.c.l.b16 %v840
    %v920 = vunpack.c.h.b16 %v840
    %v921 = vunpack.c.l.b16 %v841
    %v922 = vunpack.c.h.b16 %v841
    %v923 = vunpack.c.l.b16 %v842
    %v924 = vunpack.c.h.b16 %v842
    %v925 = vunpack.c.l.b16 %v843
    %v926 = vunpack.c.h.b16 %v843
    %v927 = vunpack.c.l.b16 %v844
    %v928 = vunpack.c.h.b16 %v844
    %v929 = vunpack.c.l.b16 %v845
    %v930 = vunpack.c.h.b16 %v845
    %v931 = vunpack.c.l.b16 %v846
    %v932 = vunpack.c.h.b16 %v846
    %v933 = vunpack.c.l.b16 %v847
    %v934 = vunpack.c.h.b16 %v847
    %v935 = vunpack.c.l.b16 %v848
    %v936 = vunpack.c.h.b16 %v848
    %v937 = vunpack.c.l.b16 %v849
    %v938 = vunpack.c.h.b16 %v849
    %v939 = vunpack.c.l.b16 %v850
    %v940 = vunpack.c.h.b16 %v850
    %v941 = vunpack.c.l.b16 %v851
    %v942 = vunpack.c.h.b16 %v851
    %v943 = vunpack.c.l.b16 %v852
    %v944 = vunpack.c.h.b16 %v852
    %v945 = vunpack.c.l.b16 %v853
    %v946 = vunpack.c.h.b16 %v853
    %v947 = vunpack.c.l.b16 %v854
    %v948 = vunpack.c.h.b16 %v854
    %v949 = vunpack.c.l.b16 %v855
    %v950 = vunpack.c.h.b16 %v855
    %v951 = vunpack.c.l.b16 %v856
    %v952 = vunpack.c.h.b16 %v856
    %v953 = vunpack.c.l.b16 %v857
    %v954 = vunpack.c.h.b16 %v857
    %v955 = vunpack.c.l.b16 %v858
    %v956 = vunpack.c.h.b16 %v858
    %v957 = vunpack.c.l.b16 %v859
    %v958 = vunpack.c.h.b16 %v859
    %v959 = vunpack.c.l.b16 %v860
    %v960 = vunpack.c.h.b16 %v860
    %v961 = vunpack.c.l.b16 %v861
    %v962 = vunpack.c.h.b16 %v861
    %v963 = vunpack.c.l.b16 %v862
    %v964 = vunpack.c.h.b16 %v862
    %v965 = vunpack.c.l.b16 %v863
    %v966 = vunpack.c.h.b16 %v863
    %v967 = vunpack.c.l.b16 %v864
    %v968 = vunpack.c.h.b16 %v864
    %v969 = vunpack.c.l.b16 %v865
    %v970 = vunpack.c.h.b16 %v865
    %v971 = vunpack.c.l.b16 %v866
    %v972 = vunpack.c.h.b16 %v866
    %v973 = vunpack.c.l.b16 %v867
    %v974 = vunpack.c.h.b16 %v867
    %v975 = vunpack.c.l.b16 %v868
    %v976 = vunpack.c.h.b16 %v868
    %v977 = vpack.c.b16 %v915, %v913
    %v978 = vpack.c.b16 %v916, %v914
    %v979 = vpack.c.b16 %v919, %v917
    %v980 = vpack.c.b16 %v920, %v918
    %v981 = vpack.c.b16 %v923, %v921
    %v982 = vpack.c.b16 %v924, %v922
    %v983 = vpack.c.b16 %v927, %v925
    %v984 = vpack.c.b16 %v928, %v926
    %v985 = vpack.c.b16 %v931, %v929
    %v986 = vpack.c.b16 %v932, %v930
    %v987 = vpack.c.b16 %v935, %v933
    %v988 = vpack.c.b16 %v936, %v934
    %v989 = vpack.c.b16 %v939, %v937
    %v990 = vpack.c.b16 %v940, %v938
    %v991 = vpack.c.b16 %v943, %v941
    %v992 = vpack.c.b16 %v944, %v942
    %v993 = vpack.c.b16 %v947, %v945
    %v994 = vpack.c.b16 %v948, %v946
    %v995 = vpack.c.b16 %v951, %v949
    %v996 = vpack.c.b16 %v952, %v950
    %v997 = vpack.c.b16 %v955, %v953
    %v998 = vpack.c.b16 %v956, %v954
    %v999 = vpack.c.b16 %v959, %v957
    %v1000 = vpack.c.b16 %v960, %v958
    %v1001 = vpack.c.b16 %v963, %v961
    %v1002 = vpack.c.b16 %v964, %v962
    %v1003 = vpack.c.b16 %v967, %v965
    %v1004 = vpack.c.b16 %v968, %v966
    %v1005 = vpack.c.b16 %v971, %v969
    %v1006 = vpack.c.b16 %v972, %v970
    %v1007 = vpack.c.b16 %v975, %v973
    %v1008 = vpack.c.b16 %v976, %v974
    %1041 = vmatprep.subr.bf16.mxu0 %v978
    %1042 = vmatpush1.bf16.msra.mxu0 %v977
    %1043 = vmatprep.subr.bf16.mxu0 %v980
    %1044 = vmatpush1.bf16.msra.mxu0 %v979
    %1045 = vmatprep.subr.bf16.mxu0 %v982
    %1046 = vmatpush1.bf16.msra.mxu0 %v981
    %1047 = vmatprep.subr.bf16.mxu0 %v984
    %1048 = vmatpush1.bf16.msra.mxu0 %v983
    %1049 = vmatprep.subr.bf16.mxu0 %v986
    %1050 = vmatpush1.bf16.msra.mxu0 %v985
    %1051 = vmatprep.subr.bf16.mxu0 %v988
    %1052 = vmatpush1.bf16.msra.mxu0 %v987
    %1053 = vmatprep.subr.bf16.mxu0 %v990
    %1054 = vmatpush1.bf16.msra.mxu0 %v989
    %1055 = vmatprep.subr.bf16.mxu0 %v992
    %1056 = vmatpush1.bf16.msra.mxu0 %v991
    %1057 = vmatprep.subr.bf16.mxu0 %v994
    %1058 = vmatpush1.bf16.msra.mxu0 %v993
    %1059 = vmatprep.subr.bf16.mxu0 %v996
    %1060 = vmatpush1.bf16.msra.mxu0 %v995
    %1061 = vmatprep.subr.bf16.mxu0 %v998
    %1062 = vmatpush1.bf16.msra.mxu0 %v997
    %1063 = vmatprep.subr.bf16.mxu0 %v1000
    %1064 = vmatpush1.bf16.msra.mxu0 %v999
    %1065 = vmatprep.subr.bf16.mxu0 %v1002
    %1066 = vmatpush1.bf16.msra.mxu0 %v1001
    %1067 = vmatprep.subr.bf16.mxu0 %v1004
    %1068 = vmatpush1.bf16.msra.mxu0 %v1003
    %1069 = vmatprep.subr.bf16.mxu0 %v1006
    %1070 = vmatpush1.bf16.msra.mxu0 %v1005
    %1071 = vmatprep.subr.bf16.mxu0 %v1008
    %1072 = vmatpush1.bf16.msra.mxu0 %v1007
    %1073 = vmatprep.mubr.bf16.mxu0 %v836
    %1074 = vmatmul.mubr.bf16.gmra.mrb[0].mxu0 %v835
    %v1075 = vpop.f32.mrb[0].mxu0
    %v1076 = vadd.f32 %v874, %v1075
    %v1077 = vpop.f32.mrb[0].mxu0
    %v1078 = vadd.f32 %v878, %v1077
    %v1079 = vpop.f32.mrb[0].mxu0
    %v1080 = vpop.f32.mrb[0].mxu0
    %1081 = vdwg.mxu0
    %v1084 = vcombine.low %v1076, %v1078
    %v1086 = vunpack.c.l.s4 1983009808
    %v1087 = vunpack.c.0.s8 %v1086
    %v1088 = vlaneseq
    %v1089 = vshrl.u32 %v1088, 7
    %v1090 = vsub.s32 %v1087, %v1089
    %v1091 = vrot.slane %v1084, %v1090
    %1093 = vst [vmem:[#allocation11] sm:$0xf] %v1091
    // Predicated region
    $region42: #{pytorch_mlp_forward.1} parent=1 // pred_check
      _
    $region43: #{pytorch_mlp_forward.1} parent=1 // pred_check_branch
      %1095 = sbr.rel (0) target = $region45
    $region44: #{pytorch_mlp_forward.1} parent=1 // pred_region
      %s1097 = ssub.s32 64, 64
      %1098 = vsyncadd [#allocation4], %s1097
      %s1100 = sshll.u32 [#allocation11], 4
      %s1101 = int_to_ptr.vmem [resolvable:$true] %s1100
      %1103 = dma.vmem_to_hbm [thread:$0]  %s1101, 64, %s5, [#allocation4]
    $region45: #{pytorch_mlp_forward.1} parent=1 // pred_fallthru
      _
    // Predicated region
    $region46: #{pytorch_mlp_forward.1} parent=1 // pred_check
      _
    $region47: #{pytorch_mlp_forward.1} parent=1 // pred_check_branch
      %1105 = sbr.rel (0) target = $region49
    $region48: #{pytorch_mlp_forward.1} parent=1 // pred_region
      %1106 = dma.done [#allocation4], 64
    $region49: #{pytorch_mlp_forward.1} parent=1 // pred_fallthru
      _
    %1107 = vsyncpa [#allocation3], 1
    %1108 = vsyncpa [#allocation6], 1
    %1109 = vsyncpa [#allocation9], 1
    %1110 = vsyncpa [#allocation4], 1

</llo_original>
